<compile_context>
chip_gen: v6e
topology: v6e:2x2x1
jax: 0.10.0
libtpu: 0.0.40
codegen_flags: <defaults>
</compile_context>

<pallas_src>
import functools
import math

import jax
import jax.numpy as jnp
from jax.experimental import pallas as pl
from jax.experimental.pallas import tpu as pltpu


def _cdiv(a, b):
    return -(-a // b)


def _lane_concat_kernel(*refs, lane_offsets, lane_widths):
    """Path A: blocks are (nb, C_i*trail) -> (nb, C_total*trail).

    Concat offsets are lane offsets (multiples of `trail`), so stores are
    full-lane, unmasked copies; the dtype cast rides the copy on the VPU.
    """
    out_ref = refs[-1]
    for in_ref, off, w in zip(refs[:-1], lane_offsets, lane_widths):
        out_ref[:, off:off + w] = in_ref[...].astype(out_ref.dtype)


def _sublane_concat_kernel(*refs, offsets, sizes):
    """Path B: blocks are (nb, C_i, nt) -> (nb, C_total, nt); trail is tiled."""
    out_ref = refs[-1]
    for in_ref, off, sz in zip(refs[:-1], offsets, sizes):
        out_ref[:, off:off + sz, :] = in_ref[...].astype(out_ref.dtype)


def pallas_concat(tensors, dim=1, *, max_block_bytes=4 << 20,
                  vmem_limit_bytes=48 << 20):
    """Concatenate a list/tuple of arrays along `dim` with a Pallas TPU kernel."""
    tensors = [jnp.asarray(t) for t in tensors]
    if len(tensors) == 1:
        return tensors[0]

    ndim = tensors[0].ndim
    d = dim % ndim
    base = tensors[0].shape
    for t in tensors:
        assert t.ndim == ndim, "all tensors must have the same rank"
        assert t.shape[:d] == base[:d] and t.shape[d + 1:] == base[d + 1:], (
            "all tensors must match on non-concat dims")

    # torch.cat-style promotion (inputs usually share a dtype; cast is free
    # inside the kernel either way).
    out_dtype = jnp.result_type(*tensors)
    out_itemsize = jnp.dtype(out_dtype).itemsize

    lead = int(math.prod(base[:d]))            # dims before the concat dim
    trail = int(math.prod(base[d + 1:]))       # dims after the concat dim (lane axis)
    total = int(sum(int(t.shape[d]) for t in tensors))
    out_shape = base[:d] + (total,) + base[d + 1:]

    # Degenerate / empty shapes: let XLA handle them.
    if lead == 0 or trail == 0 or total == 0:
        return jnp.concatenate([t.astype(out_dtype) for t in tensors], axis=d)

    # Drop inputs that are empty along the concat dim.
    tensors = [t for t in tensors if t.shape[d] > 0]
    if len(tensors) == 1:
        return tensors[0].astype(out_dtype)

    sizes = [int(t.shape[d]) for t in tensors]
    offsets = [int(sum(sizes[:i])) for i in range(len(sizes))]
    in_itemsizes = [jnp.dtype(t.dtype).itemsize for t in tensors]

    in_bytes = sum(t.size * isz for t, isz in zip(tensors, in_itemsizes))
    out_bytes = lead * total * trail * out_itemsize
    cost = pl.CostEstimate(flops=0, transcendentals=0,
                           bytes_accessed=int(in_bytes + out_bytes))
    compiler_kwargs = dict(vmem_limit_bytes=int(vmem_limit_bytes))

    # Working-set bytes of one lead row (all inputs + output), pre double-buffer.
    col_bytes = sum(s * isz for s, isz in zip(sizes, in_itemsizes)) + total * out_itemsize
    row_bytes = trail * col_bytes

    # ---------------- Path A: lane-aligned 2-D flatten ----------------
    use_lane_path = row_bytes <= max_block_bytes
    if use_lane_path:
        nb_cap = max(1, max_block_bytes // row_bytes)
        if nb_cap >= lead:
            nb = lead
            # v7x megacore: if everything fits one block but there is real
            # data, split the lead axis into a few 8-aligned blocks so both
            # TensorCores get work.
            if lead >= 16 and lead * row_bytes > (2 << 20):
                nb = min(lead, max(8, ((_cdiv(lead, 4) + 7) // 8) * 8))
        elif nb_cap >= 8:
            nb = (nb_cap // 8) * 8             # keep sublane block 8-aligned
        else:
            use_lane_path = False              # nb would be 1..7 (< lead): use 3-D path

    if use_lane_path:
        lane_widths = tuple(s * trail for s in sizes)
        lane_offsets = tuple(o * trail for o in offsets)
        xs = [t.reshape(lead, s * trail) for t, s in zip(tensors, sizes)]
        kernel = functools.partial(_lane_concat_kernel,
                                   lane_offsets=lane_offsets,
                                   lane_widths=lane_widths)
        out2 = pl.pallas_call(
            kernel,
            out_shape=jax.ShapeDtypeStruct((lead, total * trail), out_dtype),
            grid=(_cdiv(lead, nb),),
            in_specs=[pl.BlockSpec((nb, w), lambda b: (b, 0)) for w in lane_widths],
            out_specs=pl.BlockSpec((nb, total * trail), lambda b: (b, 0)),
            compiler_params=pltpu.CompilerParams(
                dimension_semantics=("parallel",), **compiler_kwargs),
            cost_estimate=cost,
        )(*xs)
        return out2.reshape(out_shape)

    # ---------------- Path B: trail-tiled 3-D (lead, C, trail) ----------------
    # Lanes per block: multiple of 128 that fits the budget at nb = 1.
    nt_cap = max(128, (max_block_bytes // col_bytes) // 128 * 128)
    nt = trail if nt_cap >= trail else nt_cap
    nb = min(lead, max(1, max_block_bytes // (col_bytes * nt)))
    # TODO(synk): if trail < 128 and a single (1, C_total, trail) block still
    # exceeds VMEM, the concat dim itself would need tiling; not implemented.
    grid = (_cdiv(lead, nb), _cdiv(trail, nt))
    xs = [t.reshape(lead, s, trail) for t, s in zip(tensors, sizes)]
    kernel = functools.partial(_sublane_concat_kernel,
                               offsets=tuple(offsets), sizes=tuple(sizes))
    out3 = pl.pallas_call(
        kernel,
        out_shape=jax.ShapeDtypeStruct((lead, total, trail), out_dtype),
        grid=grid,
        in_specs=[pl.BlockSpec((nb, s, nt), lambda b, t: (b, 0, t)) for s in sizes],
        out_specs=pl.BlockSpec((nb, total, nt), lambda b, t: (b, 0, t)),
        compiler_params=pltpu.CompilerParams(
            dimension_semantics=("parallel", "parallel"), **compiler_kwargs),
        cost_estimate=cost,
    )(*xs)
    return out3.reshape(out_shape)


if __name__ == "__main__":
    key = jax.random.PRNGKey(0)
    k1, k2, k3 = jax.random.split(key, 3)

    # Small NCHW feature maps, concatenated along the channel dim (Concat default).
    N, H, W = 2, 16, 16
    x1 = jax.random.normal(k1, (N, 4, H, W), dtype=jnp.float32)
    x2 = jax.random.normal(k2, (N, 6, H, W), dtype=jnp.float32)
    x3 = jax.random.normal(k3, (N, 2, H, W), dtype=jnp.float32)

    out = pallas_concat([x1, x2, x3], dim=1)
    out = jax.block_until_ready(out)
    ref = jnp.concatenate([x1, x2, x3], axis=1)
    assert out.shape == ref.shape, (out.shape, ref.shape)
    assert jnp.array_equal(out, ref), float(jnp.max(jnp.abs(out - ref)))

    # Exercise the trail-tiled (Path B) variant by forcing a tiny block budget
    # (emulates batch-1 inference where one lead row exceeds the budget).
    y1 = jax.random.normal(k1, (1, 8, H, W), dtype=jnp.float32)
    y2 = jax.random.normal(k2, (1, 8, H, W), dtype=jnp.float32)
    out_b = pallas_concat([y1, y2], dim=1, max_block_bytes=16 << 10)
    out_b = jax.block_until_ready(out_b)
    ref_b = jnp.concatenate([y1, y2], axis=1)
    assert out_b.shape == ref_b.shape, (out_b.shape, ref_b.shape)
    assert jnp.array_equal(out_b, ref_b), float(jnp.max(jnp.abs(out_b - ref_b)))

    print("KERNEL_OK")
</pallas_src>

<mosaic_0001>
module attributes {stable_mosaic.version = 11 : i64} {
  func.func @_lane_concat_kernel(%arg0: i32, %arg1: memref<2x1024xf32, #tpu.memory_space<vmem>>, %arg2: memref<2x1536xf32, #tpu.memory_space<vmem>>, %arg3: memref<2x512xf32, #tpu.memory_space<vmem>>, %arg4: memref<2x3072xf32, #tpu.memory_space<vmem>>) attributes {dimension_semantics = [#tpu.dimension_semantics<parallel>], iteration_bounds = array<i64: 1>, scalar_prefetch = 0 : i64, scratch_operands = 0 : i64, tpu.core_type = #tpu.core_type<tc>, window_params = [{transform_indices = @transform_0, window_bounds = array<i64: 2, 1024>}, {transform_indices = @transform_1, window_bounds = array<i64: 2, 1536>}, {transform_indices = @transform_2, window_bounds = array<i64: 2, 512>}, {transform_indices = @transform_3, window_bounds = array<i64: 2, 3072>}]} {
    %c0 = arith.constant 0 : index
    %c0_0 = arith.constant 0 : index
    %0 = vector.load %arg1[%c0, %c0_0] : memref<2x1024xf32, #tpu.memory_space<vmem>>, vector<2x1024xf32>
    %c0_1 = arith.constant 0 : index
    %c0_2 = arith.constant 0 : index
    %1 = vector.load %arg4[%c0_1, %c0_2] : memref<2x3072xf32, #tpu.memory_space<vmem>>, vector<2x1024xf32>
    tpu.vector_store %arg4[%c0_1, %c0_2], %0 {strides = array<i32>} : memref<2x3072xf32, #tpu.memory_space<vmem>>, vector<2x1024xf32>,
    %c0_3 = arith.constant 0 : index
    %c0_4 = arith.constant 0 : index
    %2 = vector.load %arg2[%c0_3, %c0_4] : memref<2x1536xf32, #tpu.memory_space<vmem>>, vector<2x1536xf32>
    %c0_5 = arith.constant 0 : index
    %c1024 = arith.constant 1024 : index
    %3 = vector.load %arg4[%c0_5, %c1024] : memref<2x3072xf32, #tpu.memory_space<vmem>>, vector<2x1536xf32>
    tpu.vector_store %arg4[%c0_5, %c1024], %2 {strides = array<i32>} : memref<2x3072xf32, #tpu.memory_space<vmem>>, vector<2x1536xf32>,
    %c0_6 = arith.constant 0 : index
    %c0_7 = arith.constant 0 : index
    %4 = vector.load %arg3[%c0_6, %c0_7] : memref<2x512xf32, #tpu.memory_space<vmem>>, vector<2x512xf32>
    %c0_8 = arith.constant 0 : index
    %c2560 = arith.constant 2560 : index
    %5 = vector.load %arg4[%c0_8, %c2560] : memref<2x3072xf32, #tpu.memory_space<vmem>>, vector<2x512xf32>
    tpu.vector_store %arg4[%c0_8, %c2560], %4 {strides = array<i32>} : memref<2x3072xf32, #tpu.memory_space<vmem>>, vector<2x512xf32>,
    return
  }
  func.func @transform_0(%arg0: i32) -> (i32, i32) {
    %c0_i32 = arith.constant 0 : i32
    %c0_i32_0 = arith.constant 0 : i32
    return %arg0, %c0_i32 : i32, i32
  }
  func.func @transform_1(%arg0: i32) -> (i32, i32) {
    %c0_i32 = arith.constant 0 : i32
    %c0_i32_0 = arith.constant 0 : i32
    return %arg0, %c0_i32 : i32, i32
  }
  func.func @transform_2(%arg0: i32) -> (i32, i32) {
    %c0_i32 = arith.constant 0 : i32
    %c0_i32_0 = arith.constant 0 : i32
    return %arg0, %c0_i32 : i32, i32
  }
  func.func @transform_3(%arg0: i32) -> (i32, i32) {
    %c0_i32 = arith.constant 0 : i32
    %c0_i32_0 = arith.constant 0 : i32
    return %arg0, %c0_i32 : i32, i32
  }
}

</mosaic_0001>

<llo_original>
// kernel: tpu_custom_call.1
$region0: #{tpu_custom_call.1}
  #allocation0 [shape = 'u32[]', space=smem, size = 0x4, offset = 0x4, fixed_abs, tag = 'smem constant byte address 0x4 - core index']
  #allocation1 [shape = 'u32[144,128]{1,0:T(1,128)}', space=vmem, size = 0x12000, scoped, tag = 'internal scratch']
  %s0 = inlined_call_operand.hbm [shape: f32[2,1024], index: 0, kind: input, shape index: {}]
  %s1 = inlined_call_operand.hbm [shape: f32[2,1536], index: 1, kind: input, shape index: {}]
  %s2 = inlined_call_operand.hbm [shape: f32[2,512], index: 2, kind: input, shape index: {}]
  %s3 = inlined_call_operand.hbm [shape: f32[2,3072], index: 3, kind: output, shape index: {}]
  %s4 = sld [smem:[#allocation0]]
  $region34: #{tpu_custom_call.1} parent=0
    _
  %s6 = ssub.s32 1, %s4
  %s7 = scalar_select 0, %s6, %s4
  $region1: #{tpu_custom_call.1} parent=0
    #allocation2 [shape = 'u8[8192]{0}', space=vmem, size = 0x2000, scoped, tag = 'input window, operand 0, single buffered']
    #allocation3 [shape = 's32[1]{0}', space=sflag, size = 0x4, scoped, tag = 'scoped memory for tpu_custom_call.1']
    #allocation4 [shape = 's32[1]{0}', space=sflag, size = 0x4, scoped, tag = 'scoped memory for tpu_custom_call.1']
    #allocation5 [shape = 'u8[12288]{0}', space=vmem, size = 0x3000, scoped, tag = 'input window, operand 1, single buffered']
    #allocation6 [shape = 's32[1]{0}', space=sflag, size = 0x4, scoped, tag = 'scoped memory for tpu_custom_call.1']
    #allocation7 [shape = 'u8[4096]{0}', space=vmem, size = 0x1000, scoped, tag = 'input window, operand 2, single buffered']
    #allocation8 [shape = 'u8[24576]{0}', space=vmem, size = 0x6000, scoped, tag = 'output window, operand 0, single buffered']
    %8 = vsyncpa [#allocation3], 0
    %9 = vsyncpa [#allocation6], 0
    %10 = vsyncpa [#allocation4], 0
    // Predicated region
    $region2: #{tpu_custom_call.1} parent=1 // pred_check
      _
    $region3: #{tpu_custom_call.1} parent=1 // pred_check_branch
      %12 = sbr.rel (0) target = $region5
    $region4: #{tpu_custom_call.1} parent=1 // pred_region
      %s14 = ssub.s32 256, 256
      %15 = vsyncadd [#allocation3], %s14
      %s17 = sshll.u32 [#allocation2], 4
      %s18 = int_to_ptr.vmem [resolvable:$true] %s17
      %20 = dma.hbm_to_vmem [thread:$0]  %s0, 256, %s18, [#allocation3]
    $region5: #{tpu_custom_call.1} parent=1 // pred_fallthru
      _
    // Predicated region
    $region6: #{tpu_custom_call.1} parent=1 // pred_check
      _
    $region7: #{tpu_custom_call.1} parent=1 // pred_check_branch
      %22 = sbr.rel (0) target = $region9
    $region8: #{tpu_custom_call.1} parent=1 // pred_region
      %s24 = ssub.s32 384, 384
      %25 = vsyncadd [#allocation6], %s24
      %s27 = sshll.u32 [#allocation5], 4
      %s28 = int_to_ptr.vmem [resolvable:$true] %s27
      %30 = dma.hbm_to_vmem [thread:$0]  %s1, 384, %s28, [#allocation6]
    $region9: #{tpu_custom_call.1} parent=1 // pred_fallthru
      _
    // Predicated region
    $region10: #{tpu_custom_call.1} parent=1 // pred_check
      _
    $region11: #{tpu_custom_call.1} parent=1 // pred_check_branch
      %32 = sbr.rel (0) target = $region13
    $region12: #{tpu_custom_call.1} parent=1 // pred_region
      %s34 = ssub.s32 128, 128
      %35 = vsyncadd [#allocation6], %s34
      %s37 = sshll.u32 [#allocation7], 4
      %s38 = int_to_ptr.vmem [resolvable:$true] %s37
      %40 = dma.hbm_to_vmem [thread:$0]  %s2, 128, %s38, [#allocation6]
    $region13: #{tpu_custom_call.1} parent=1 // pred_fallthru
      _
    // Predicated region
    $region14: #{tpu_custom_call.1} parent=1 // pred_check
      _
    $region15: #{tpu_custom_call.1} parent=1 // pred_check_branch
      %42 = sbr.rel (0) target = $region17
    $region16: #{tpu_custom_call.1} parent=1 // pred_region
      %43 = dma.done [#allocation3], 256
    $region17: #{tpu_custom_call.1} parent=1 // pred_fallthru
      _
    // Predicated region
    $region18: #{tpu_custom_call.1} parent=1 // pred_check
      _
    $region19: #{tpu_custom_call.1} parent=1 // pred_check_branch
      %45 = sbr.rel (0) target = $region21
    $region20: #{tpu_custom_call.1} parent=1 // pred_region
      %46 = dma.done [#allocation6], 384
    $region21: #{tpu_custom_call.1} parent=1 // pred_fallthru
      _
    // Predicated region
    $region22: #{tpu_custom_call.1} parent=1 // pred_check
      _
    $region23: #{tpu_custom_call.1} parent=1 // pred_check_branch
      %48 = sbr.rel (0) target = $region25
    $region24: #{tpu_custom_call.1} parent=1 // pred_region
      %49 = dma.done [#allocation6], 128
    $region25: #{tpu_custom_call.1} parent=1 // pred_fallthru
      _
    %v50 = vld [vmem:[#allocation2] sm:$0xff]
    %v51 = vld [vmem:[#allocation2 + $0x8] sm:$0xff]
    %52 = vst [vmem:[#allocation8] sm:$0xff] %v50
    %53 = vst [vmem:[#allocation8 + $0x8] sm:$0xff] %v51
    %v54 = vld [vmem:[#allocation5] sm:$0xff]
    %v55 = vld [vmem:[#allocation5 + $0x8] sm:$0xff]
    %v56 = vld [vmem:[#allocation5 + $0x10] sm:$0xff]
    %57 = vst [vmem:[#allocation8 + $0x10] sm:$0xff] %v54
    %58 = vst [vmem:[#allocation8 + $0x18] sm:$0xff] %v55
    %59 = vst [vmem:[#allocation8 + $0x20] sm:$0xff] %v56
    %v60 = vld [vmem:[#allocation7] sm:$0xff]
    %61 = vst [vmem:[#allocation8 + $0x28] sm:$0xff] %v60
    // Predicated region
    $region26: #{tpu_custom_call.1} parent=1 // pred_check
      _
    $region27: #{tpu_custom_call.1} parent=1 // pred_check_branch
      %63 = sbr.rel (0) target = $region29
    $region28: #{tpu_custom_call.1} parent=1 // pred_region
      %s65 = ssub.s32 768, 768
      %66 = vsyncadd [#allocation4], %s65
      %s68 = sshll.u32 [#allocation8], 4
      %s69 = int_to_ptr.vmem [resolvable:$true] %s68
      %71 = dma.vmem_to_hbm [thread:$0]  %s69, 768, %s3, [#allocation4]
    $region29: #{tpu_custom_call.1} parent=1 // pred_fallthru
      _
    // Predicated region
    $region30: #{tpu_custom_call.1} parent=1 // pred_check
      _
    $region31: #{tpu_custom_call.1} parent=1 // pred_check_branch
      %73 = sbr.rel (0) target = $region33
    $region32: #{tpu_custom_call.1} parent=1 // pred_region
      %74 = dma.done [#allocation4], 768
    $region33: #{tpu_custom_call.1} parent=1 // pred_fallthru
      _
    %75 = vsyncpa [#allocation3], 1
    %76 = vsyncpa [#allocation6], 1
    %77 = vsyncpa [#allocation4], 1

</llo_original>
